<compile_context>
chip_gen: v5e
topology: v5e:2x2
jax: 0.10.0
libtpu: 0.0.40
codegen_flags: <defaults>
</compile_context>

<pallas_src>
import functools

import jax
import jax.numpy as jnp
from jax import lax
from jax.experimental import pallas as pl
from jax.experimental.pallas import tpu as pltpu


# (dh, dw) spatial offsets of the 9 conv taps, in the same (kh, kw) row-major
# order used by the packed weight (group g = (dh+1)*3 + (dw+1)).
_TAPS = tuple((dh, dw) for dh in (-1, 0, 1) for dw in (-1, 0, 1))
_GROUP = 8  # sublane-aligned row stride per tap group in the packed weight


def _shift_lanes(a, s, m):
    """result[:, p] = a[:, p + s] for 0 <= p + s < m, else 0  (static s).

    Zero-fill + lane slice instead of roll+mask: the zero fill already encodes
    the flat (row) out-of-bounds mask of the kh taps, only the kw column masks
    remain.  Plain slice/concatenate, so it lowers on Mosaic and interprets.
    """
    if s == 0:
        return a
    rows = a.shape[0]
    if abs(s) >= m:
        return jnp.zeros_like(a)
    zeros = jnp.zeros((rows, abs(s)), a.dtype)
    if s > 0:
        return jnp.concatenate([a[:, s:], zeros], axis=1)
    return jnp.concatenate([zeros, a[:, : m + s]], axis=1)


def _deconv_sigmoid_kernel(x_ref, w_ref, b_ref, o_ref, *, width):
    """One grid step processes Bt images.

    x_ref : (Bt, Cin, M)       bf16 flattened images (M = H*W), lane-dense
    w_ref : (9*8, Cin)         bf16 packed weight; rows g*8 : g*8+Cout = tap g
    b_ref : (Cout, 1)          f32 bias
    o_ref : (Bt, Cout, M)      f32 sigmoid(deconv(x))
    """
    bt, _, m = x_ref.shape
    cout = o_ref.shape[1]

    # Column-validity masks for the kw = -1 / +1 taps, computed once per step
    # at the smallest shape (1, M) and shared across the Bt images.
    col = lax.broadcasted_iota(jnp.int32, (1, m), 1) % width
    left_ok = col >= 1            # reading x[..., c-1] is valid
    right_ok = col <= width - 2   # reading x[..., c+1] is valid

    wmat = w_ref[...]             # bf16, pre-cast in the wrapper (no per-step astype)
    bias = b_ref[...]             # f32, added once in the epilogue

    for b in range(bt):           # Bt is small and static
        # Single MXU matmul with K = Cin: all 9 taps' partial sums at once.
        z = jnp.dot(wmat, x_ref[b], preferred_element_type=jnp.float32)  # (72, M) f32

        acc = jnp.zeros((_GROUP, m), jnp.float32)
        for g, (dh, dw) in enumerate(_TAPS):
            zg = z[g * _GROUP:(g + 1) * _GROUP, :]        # aligned 8-row view
            t = _shift_lanes(zg, dh * width + dw, m)      # tiny (8, M) lane shift
            if dw == -1:
                t = jnp.where(left_ok, t, 0.0)
            elif dw == 1:
                t = jnp.where(right_ok, t, 0.0)
            acc = acc + t

        y = acc[:cout, :] + bias
        o_ref[b] = jax.nn.sigmoid(y).astype(o_ref.dtype)  # f32 sigmoid (EUP)


def _pick_batch_tile(n, bytes_per_image, target_bytes=512 * 1024):
    """Largest divisor of n keeping the input block <= ~target bytes while still
    leaving >=2 grid steps when the batch allows it (v7x: 2 TensorCores)."""
    divisors = [d for d in range(1, n + 1) if n % d == 0]
    cands = [d for d in divisors if n // d >= 2] or [n]
    fitting = [d for d in cands if d * bytes_per_image <= target_bytes]
    return max(fitting) if fitting else min(cands)


def _vmem_limit_bytes():
    """~75% of physical VMEM: ~96 MiB on v5e/v6e (128 MiB), ~48 MiB on v7x (64 MiB)."""
    try:
        cap = int(pltpu.get_tpu_info().vmem_capacity_bytes)
    except Exception:
        cap = 64 * 1024 * 1024
    return (cap * 3) // 4


def decoder_forward(x_nchw, weight_iohw, bias):
    """ConvTranspose2d(Cin->Cout, k=3, s=1, p=1) + Sigmoid.  NCHW in / NCHW out."""
    n, cin, h, w = x_nchw.shape
    w_in, cout, kh, kw = weight_iohw.shape
    assert w_in == cin and (kh, kw) == (3, 3)
    m = h * w

    # ConvTranspose2d(stride=1, padding=1) == Conv2d(padding=1) with the kernel
    # flipped in (kh, kw) and the in/out channel axes swapped.
    w_conv = jnp.transpose(jnp.flip(weight_iohw, axis=(2, 3)), (1, 0, 2, 3))  # (Cout,Cin,3,3)
    # Pack as (9 groups x 8 sublane-aligned rows, Cin): group g = kh*3 + kw holds
    # w_conv[:, :, kh, kw] in its first Cout rows, zeros elsewhere.  The zero rows
    # are free on the MXU but make every per-tap z slice an aligned 8-row view.
    w_groups = jnp.transpose(w_conv, (2, 3, 0, 1)).reshape(9, cout, cin)
    w_packed = (
        jnp.zeros((9, _GROUP, cin), jnp.float32)
        .at[:, :cout, :].set(w_groups)
        .reshape(9 * _GROUP, cin)
        .astype(jnp.bfloat16)                         # pre-cast: no per-step astype
    )

    # bf16 activations halve HBM traffic (kernel is HBM-bound); f32 accumulation
    # inside the kernel.  Contiguous reshape only — no wrapper transposes/pads.
    x_flat = x_nchw.reshape(n, cin, m).astype(jnp.bfloat16)
    b_col = bias.reshape(cout, 1).astype(jnp.float32)  # added to the f32 accumulator

    bt = _pick_batch_tile(n, cin * m * 2)              # images per grid step

    out_flat = pl.pallas_call(
        functools.partial(_deconv_sigmoid_kernel, width=w),
        grid=(n // bt,),
        in_specs=[
            pl.BlockSpec((bt, cin, m), lambda i: (i, 0, 0)),
            pl.BlockSpec((9 * _GROUP, cin), lambda i: (0, 0)),
            pl.BlockSpec((cout, 1), lambda i: (0, 0)),
        ],
        out_specs=pl.BlockSpec((bt, cout, m), lambda i: (i, 0, 0)),
        out_shape=jax.ShapeDtypeStruct((n, cout, m), jnp.float32),
        compiler_params=pltpu.CompilerParams(
            dimension_semantics=("parallel",),         # batch blocks split across TCs
            vmem_limit_bytes=_vmem_limit_bytes(),
        ),
    )(x_flat, w_packed, b_col)

    # TODO(synk): for very large spatial extents (per-image slab beyond ~40 MiB on
    # v7x's 64 MiB VMEM) add an H-tile grid axis with a 1-row halo via manual DMA.
    return out_flat.reshape(n, cout, h, w)


def decoder_reference(x_nchw, weight_iohw, bias):
    """Pure-JAX reference mirroring nn.ConvTranspose2d(64,3,3,1,1) + Sigmoid (NCHW)."""
    w_conv = jnp.transpose(jnp.flip(weight_iohw, axis=(2, 3)), (1, 0, 2, 3))  # OIHW
    y = lax.conv_general_dilated(
        x_nchw, w_conv, window_strides=(1, 1), padding=((1, 1), (1, 1)),
        dimension_numbers=("NCHW", "OIHW", "NCHW"))
    return jax.nn.sigmoid(y + bias[None, :, None, None])


if __name__ == "__main__":
    key = jax.random.PRNGKey(0)
    k_x, k_w, k_b = jax.random.split(key, 3)

    N, CIN, COUT, H, W = 2, 64, 3, 16, 16
    x = jax.random.normal(k_x, (N, CIN, H, W), jnp.float32)
    # PyTorch ConvTranspose2d weight layout: (in_ch=64, out_ch=3, kh=3, kw=3)
    weight = jax.random.normal(k_w, (CIN, COUT, 3, 3), jnp.float32) * 0.1
    bias = jax.random.normal(k_b, (COUT,), jnp.float32) * 0.05

    out = jax.block_until_ready(decoder_forward(x, weight, bias))
    ref = jax.block_until_ready(decoder_reference(x, weight, bias))

    if out.shape != ref.shape or not jnp.allclose(out, ref, atol=2e-2, rtol=2e-2):
        raise AssertionError("Pallas Decoder output does not match the reference")
    print("KERNEL_OK")
</pallas_src>

<mosaic_0001>
module attributes {stable_mosaic.version = 11 : i64} {
  func.func @_deconv_sigmoid_kernel(%arg0: i32, %arg1: memref<1x64x256xbf16, #tpu.memory_space<vmem>>, %arg2: memref<72x64xbf16, #tpu.memory_space<vmem>>, %arg3: memref<3x1xf32, #tpu.memory_space<vmem>>, %arg4: memref<1x3x256xf32, #tpu.memory_space<vmem>>) attributes {dimension_semantics = [#tpu.dimension_semantics<parallel>], iteration_bounds = array<i64: 2>, scalar_prefetch = 0 : i64, scratch_operands = 0 : i64, tpu.core_type = #tpu.core_type<tc>, window_params = [{transform_indices = @transform_0, window_bounds = array<i64: 1, 64, 256>}, {pipeline_mode = #tpu.pipeline_mode<synchronous>, transform_indices = @transform_1, window_bounds = array<i64: 72, 64>}, {pipeline_mode = #tpu.pipeline_mode<synchronous>, transform_indices = @transform_2, window_bounds = array<i64: 3, 1>}, {transform_indices = @transform_3, window_bounds = array<i64: 1, 3, 256>}]} {
    %0 = tpu.iota {dimensions = array<i32: 1>} : vector<1x256xi32>
    %c16_i32 = arith.constant 16 : i32
    %c0_i32 = arith.constant 0 : i32
    %1 = arith.cmpi eq, %c16_i32, %c0_i32 : i32
    %c1_i32 = arith.constant 1 : i32
    %2 = arith.select %1, %c1_i32, %c16_i32 : i32
    %3 = vector.broadcast %2 : i32 to vector<1x256xi32>
    %4 = arith.remsi %0, %3 : vector<1x256xi32>
    %c0_i32_0 = arith.constant 0 : i32
    %5 = vector.broadcast %c0_i32_0 : i32 to vector<1x256xi32>
    %6 = arith.cmpi ne, %4, %5 : vector<1x256xi32>
    %c0_i32_1 = arith.constant 0 : i32
    %7 = vector.broadcast %c0_i32_1 : i32 to vector<1x256xi32>
    %8 = arith.cmpi slt, %4, %7 : vector<1x256xi32>
    %c0_i32_2 = arith.constant 0 : i32
    %9 = arith.cmpi slt, %2, %c0_i32_2 : i32
    %10 = vector.broadcast %9 : i1 to vector<1x256xi1>
    %11 = vector.broadcast %10 : vector<1x256xi1> to vector<1x256xi1>
    %12 = arith.xori %8, %11 : vector<1x256xi1>
    %13 = arith.andi %12, %6 : vector<1x256xi1>
    %14 = vector.broadcast %2 : i32 to vector<1x256xi32>
    %15 = arith.addi %4, %14 : vector<1x256xi32>
    %16 = arith.select %13, %15, %4 : vector<1x256xi1>, vector<1x256xi32>
    %c1_i32_3 = arith.constant 1 : i32
    %17 = vector.broadcast %c1_i32_3 : i32 to vector<1x256xi32>
    %18 = arith.cmpi sge, %16, %17 : vector<1x256xi32>
    %c14_i32 = arith.constant 14 : i32
    %19 = vector.broadcast %c14_i32 : i32 to vector<1x256xi32>
    %20 = arith.cmpi sle, %16, %19 : vector<1x256xi32>
    %c0 = arith.constant 0 : index
    %c0_4 = arith.constant 0 : index
    %21 = vector.load %arg2[%c0, %c0_4] : memref<72x64xbf16, #tpu.memory_space<vmem>>, vector<72x64xbf16>
    %c0_5 = arith.constant 0 : index
    %c0_6 = arith.constant 0 : index
    %22 = vector.load %arg3[%c0_5, %c0_6] : memref<3x1xf32, #tpu.memory_space<vmem>>, vector<3x1xf32>
    %c0_7 = arith.constant 0 : index
    %c0_8 = arith.constant 0 : index
    %c0_9 = arith.constant 0 : index
    %23 = vector.load %arg1[%c0_7, %c0_8, %c0_9] : memref<1x64x256xbf16, #tpu.memory_space<vmem>>, vector<1x64x256xbf16>
    %24 = vector.shape_cast %23 : vector<1x64x256xbf16> to vector<64x256xbf16>
    %cst = arith.constant dense<0.000000e+00> : vector<72x256xf32>
    %25 = tpu.matmul %21, %24, %cst {dimension_numbers = #tpu.dot_dimension_numbers<[1], [0], [0], [1], [0, 0, 1, 1], [], []>} : vector<72x64xbf16>, vector<64x256xbf16>, vector<72x256xf32> -> vector<72x256xf32>
    %cst_10 = arith.constant 0.000000e+00 : f32
    %26 = vector.broadcast %cst_10 : f32 to vector<8x256xf32>
    %27 = vector.extract_strided_slice %25 {offsets = [0, 0], sizes = [8, 256], strides = [1, 1]} : vector<72x256xf32> to vector<8x256xf32>
    %cst_11 = arith.constant 0.000000e+00 : f32
    %28 = vector.broadcast %cst_11 : f32 to vector<8x17xf32>
    %29 = vector.extract_strided_slice %27 {offsets = [0, 0], sizes = [8, 239], strides = [1, 1]} : vector<8x256xf32> to vector<8x239xf32>
    %30 = tpu.concatenate %28, %29 in 1 : vector<8x17xf32>, vector<8x239xf32> -> vector<8x256xf32>
    %cst_12 = arith.constant 0.000000e+00 : f32
    %31 = vector.shape_cast %18 : vector<1x256xi1> to vector<1x256xi1>
    %32 = vector.broadcast %31 : vector<1x256xi1> to vector<8x256xi1>
    %33 = vector.broadcast %cst_12 : f32 to vector<8x256xf32>
    %34 = arith.select %32, %30, %33 : vector<8x256xi1>, vector<8x256xf32>
    %35 = arith.addf %26, %34 : vector<8x256xf32>
    %36 = vector.extract_strided_slice %25 {offsets = [8, 0], sizes = [8, 256], strides = [1, 1]} : vector<72x256xf32> to vector<8x256xf32>
    %cst_13 = arith.constant 0.000000e+00 : f32
    %37 = vector.broadcast %cst_13 : f32 to vector<8x16xf32>
    %38 = vector.extract_strided_slice %36 {offsets = [0, 0], sizes = [8, 240], strides = [1, 1]} : vector<8x256xf32> to vector<8x240xf32>
    %39 = tpu.concatenate %37, %38 in 1 : vector<8x16xf32>, vector<8x240xf32> -> vector<8x256xf32>
    %40 = arith.addf %35, %39 : vector<8x256xf32>
    %41 = vector.extract_strided_slice %25 {offsets = [16, 0], sizes = [8, 256], strides = [1, 1]} : vector<72x256xf32> to vector<8x256xf32>
    %cst_14 = arith.constant 0.000000e+00 : f32
    %42 = vector.broadcast %cst_14 : f32 to vector<8x15xf32>
    %43 = vector.extract_strided_slice %41 {offsets = [0, 0], sizes = [8, 241], strides = [1, 1]} : vector<8x256xf32> to vector<8x241xf32>
    %44 = tpu.concatenate %42, %43 in 1 : vector<8x15xf32>, vector<8x241xf32> -> vector<8x256xf32>
    %cst_15 = arith.constant 0.000000e+00 : f32
    %45 = vector.shape_cast %20 : vector<1x256xi1> to vector<1x256xi1>
    %46 = vector.broadcast %45 : vector<1x256xi1> to vector<8x256xi1>
    %47 = vector.broadcast %cst_15 : f32 to vector<8x256xf32>
    %48 = arith.select %46, %44, %47 : vector<8x256xi1>, vector<8x256xf32>
    %49 = arith.addf %40, %48 : vector<8x256xf32>
    %50 = vector.extract_strided_slice %25 {offsets = [24, 0], sizes = [8, 256], strides = [1, 1]} : vector<72x256xf32> to vector<8x256xf32>
    %cst_16 = arith.constant 0.000000e+00 : f32
    %51 = vector.broadcast %cst_16 : f32 to vector<8x1xf32>
    %52 = vector.extract_strided_slice %50 {offsets = [0, 0], sizes = [8, 255], strides = [1, 1]} : vector<8x256xf32> to vector<8x255xf32>
    %53 = tpu.concatenate %51, %52 in 1 : vector<8x1xf32>, vector<8x255xf32> -> vector<8x256xf32>
    %cst_17 = arith.constant 0.000000e+00 : f32
    %54 = vector.shape_cast %18 : vector<1x256xi1> to vector<1x256xi1>
    %55 = vector.broadcast %54 : vector<1x256xi1> to vector<8x256xi1>
    %56 = vector.broadcast %cst_17 : f32 to vector<8x256xf32>
    %57 = arith.select %55, %53, %56 : vector<8x256xi1>, vector<8x256xf32>
    %58 = arith.addf %49, %57 : vector<8x256xf32>
    %59 = vector.extract_strided_slice %25 {offsets = [32, 0], sizes = [8, 256], strides = [1, 1]} : vector<72x256xf32> to vector<8x256xf32>
    %60 = arith.addf %58, %59 : vector<8x256xf32>
    %61 = vector.extract_strided_slice %25 {offsets = [40, 0], sizes = [8, 256], strides = [1, 1]} : vector<72x256xf32> to vector<8x256xf32>
    %cst_18 = arith.constant 0.000000e+00 : f32
    %62 = vector.broadcast %cst_18 : f32 to vector<8x1xf32>
    %63 = vector.extract_strided_slice %61 {offsets = [0, 1], sizes = [8, 255], strides = [1, 1]} : vector<8x256xf32> to vector<8x255xf32>
    %64 = tpu.concatenate %63, %62 in 1 : vector<8x255xf32>, vector<8x1xf32> -> vector<8x256xf32>
    %cst_19 = arith.constant 0.000000e+00 : f32
    %65 = vector.shape_cast %20 : vector<1x256xi1> to vector<1x256xi1>
    %66 = vector.broadcast %65 : vector<1x256xi1> to vector<8x256xi1>
    %67 = vector.broadcast %cst_19 : f32 to vector<8x256xf32>
    %68 = arith.select %66, %64, %67 : vector<8x256xi1>, vector<8x256xf32>
    %69 = arith.addf %60, %68 : vector<8x256xf32>
    %70 = vector.extract_strided_slice %25 {offsets = [48, 0], sizes = [8, 256], strides = [1, 1]} : vector<72x256xf32> to vector<8x256xf32>
    %cst_20 = arith.constant 0.000000e+00 : f32
    %71 = vector.broadcast %cst_20 : f32 to vector<8x15xf32>
    %72 = vector.extract_strided_slice %70 {offsets = [0, 15], sizes = [8, 241], strides = [1, 1]} : vector<8x256xf32> to vector<8x241xf32>
    %73 = tpu.concatenate %72, %71 in 1 : vector<8x241xf32>, vector<8x15xf32> -> vector<8x256xf32>
    %cst_21 = arith.constant 0.000000e+00 : f32
    %74 = vector.shape_cast %18 : vector<1x256xi1> to vector<1x256xi1>
    %75 = vector.broadcast %74 : vector<1x256xi1> to vector<8x256xi1>
    %76 = vector.broadcast %cst_21 : f32 to vector<8x256xf32>
    %77 = arith.select %75, %73, %76 : vector<8x256xi1>, vector<8x256xf32>
    %78 = arith.addf %69, %77 : vector<8x256xf32>
    %79 = vector.extract_strided_slice %25 {offsets = [56, 0], sizes = [8, 256], strides = [1, 1]} : vector<72x256xf32> to vector<8x256xf32>
    %cst_22 = arith.constant 0.000000e+00 : f32
    %80 = vector.broadcast %cst_22 : f32 to vector<8x16xf32>
    %81 = vector.extract_strided_slice %79 {offsets = [0, 16], sizes = [8, 240], strides = [1, 1]} : vector<8x256xf32> to vector<8x240xf32>
    %82 = tpu.concatenate %81, %80 in 1 : vector<8x240xf32>, vector<8x16xf32> -> vector<8x256xf32>
    %83 = arith.addf %78, %82 : vector<8x256xf32>
    %84 = vector.extract_strided_slice %25 {offsets = [64, 0], sizes = [8, 256], strides = [1, 1]} : vector<72x256xf32> to vector<8x256xf32>
    %cst_23 = arith.constant 0.000000e+00 : f32
    %85 = vector.broadcast %cst_23 : f32 to vector<8x17xf32>
    %86 = vector.extract_strided_slice %84 {offsets = [0, 17], sizes = [8, 239], strides = [1, 1]} : vector<8x256xf32> to vector<8x239xf32>
    %87 = tpu.concatenate %86, %85 in 1 : vector<8x239xf32>, vector<8x17xf32> -> vector<8x256xf32>
    %cst_24 = arith.constant 0.000000e+00 : f32
    %88 = vector.shape_cast %20 : vector<1x256xi1> to vector<1x256xi1>
    %89 = vector.broadcast %88 : vector<1x256xi1> to vector<8x256xi1>
    %90 = vector.broadcast %cst_24 : f32 to vector<8x256xf32>
    %91 = arith.select %89, %87, %90 : vector<8x256xi1>, vector<8x256xf32>
    %92 = arith.addf %83, %91 : vector<8x256xf32>
    %93 = vector.extract_strided_slice %92 {offsets = [0, 0], sizes = [3, 256], strides = [1, 1]} : vector<8x256xf32> to vector<3x256xf32>
    %94 = vector.broadcast %22 : vector<3x1xf32> to vector<3x256xf32>
    %95 = arith.addf %93, %94 : vector<3x256xf32>
    %96 = arith.negf %95 : vector<3x256xf32>
    %97 = math.exp %96 : vector<3x256xf32>
    %cst_25 = arith.constant 1.000000e+00 : f32
    %98 = vector.broadcast %cst_25 : f32 to vector<3x256xf32>
    %99 = arith.addf %98, %97 : vector<3x256xf32>
    %100 = arith.divf %98, %99 : vector<3x256xf32>
    %c0_26 = arith.constant 0 : index
    %c0_27 = arith.constant 0 : index
    %c0_28 = arith.constant 0 : index
    %101 = vector.load %arg4[%c0_26, %c0_27, %c0_28] : memref<1x3x256xf32, #tpu.memory_space<vmem>>, vector<1x3x256xf32>
    %102 = vector.shape_cast %101 : vector<1x3x256xf32> to vector<3x256xf32>
    %103 = vector.shape_cast %100 : vector<3x256xf32> to vector<1x3x256xf32>
    tpu.vector_store %arg4[%c0_26, %c0_27, %c0_28], %103 {strides = array<i32>} : memref<1x3x256xf32, #tpu.memory_space<vmem>>, vector<1x3x256xf32>,
    return
  }
  func.func @transform_0(%arg0: i32) -> (i32, i32, i32) {
    %c0_i32 = arith.constant 0 : i32
    %c0_i32_0 = arith.constant 0 : i32
    %c0_i32_1 = arith.constant 0 : i32
    return %arg0, %c0_i32, %c0_i32_0 : i32, i32, i32
  }
  func.func @transform_1(%arg0: i32) -> (i32, i32) {
    %c0_i32 = arith.constant 0 : i32
    %c0_i32_0 = arith.constant 0 : i32
    %c0_i32_1 = arith.constant 0 : i32
    return %c0_i32, %c0_i32_0 : i32, i32
  }
  func.func @transform_2(%arg0: i32) -> (i32, i32) {
    %c0_i32 = arith.constant 0 : i32
    %c0_i32_0 = arith.constant 0 : i32
    %c0_i32_1 = arith.constant 0 : i32
    return %c0_i32, %c0_i32_0 : i32, i32
  }
  func.func @transform_3(%arg0: i32) -> (i32, i32, i32) {
    %c0_i32 = arith.constant 0 : i32
    %c0_i32_0 = arith.constant 0 : i32
    %c0_i32_1 = arith.constant 0 : i32
    return %arg0, %c0_i32, %c0_i32_0 : i32, i32, i32
  }
}

</mosaic_0001>

<llo_original>
// kernel: tpu_custom_call.1
$region0: #{tpu_custom_call.1}
  #allocation0 [shape = 'u32[]', space=smem, size = 0x4, offset = 0x4, fixed_abs, tag = 'smem constant byte address 0x4 - core index']
  #allocation1 [shape = 'u32[72,128]{1,0:T(1,128)}', space=vmem, size = 0x9000, scoped, tag = 'internal scratch']
  %s0 = inlined_call_operand.hbm [shape: bf16[2,64,256], index: 0, kind: input, shape index: {}]
  %s1 = inlined_call_operand.vmem [shape: bf16[72,64], index: 1, kind: input, shape index: {}]
  %s2 = inlined_call_operand.vmem [shape: f32[3,1], index: 2, kind: input, shape index: {}]
  %s3 = inlined_call_operand.vmem [shape: f32[2,3,256], index: 3, kind: output, shape index: {}]
  %s4 = sld [smem:[#allocation0]]
  $region49: #{tpu_custom_call.1} parent=0
    _
  %s6 = ssub.s32 1, %s4
  %s7 = scalar_select 0, %s6, %s4
  $region1: #{tpu_custom_call.1} parent=0
    #allocation2 [shape = 'u8[65536]{0}', space=vmem, size = 0x10000, scoped, tag = 'input window, operand 0']
    #allocation3 [shape = 's32[2]{0}', space=sflag, size = 0x8, scoped, tag = 'scoped memory for tpu_custom_call.1']
    %8 = vsyncpa [#allocation3], 0
    %s9 = scalar_lea.sflag [#allocation3], 1
    %10 = vsyncpa %s9, 0
    loop: start=0, step=1, limit=4
    $region2: #{tpu_custom_call.1} parent=1 // loop_pre_header
      _
    $region3: #{tpu_custom_call.1} parent=1 // loop_header
      %s12 = sphi 0, %s16
      %p13 = scmp.ge.s32.totalorder %s12, 4
      %s22 = sphi 0, %s24
      %s25 = sphi 0, %s22
      %s26 = sphi 0, %s25
      %s42 = sphi 0, %s26
      %s46 = sphi 0, %s46
      %s48 = sphi 0, %s46
      %s49 = sphi 0, %s48
      %s63 = sphi 0, %s49
      %s67 = sphi 0, %s67
      %s69 = sphi 0, %s67
      %s70 = sphi 0, %s69
      %s84 = sphi 0, %s70
      %s90 = sphi 0, %s92
      %s93 = sphi 0, %s90
      %s94 = sphi 0, %s93
      %s110 = sphi 0, %s94
    $region4: #{tpu_custom_call.1} parent=1 // loop_header_branch
      %15 = sbr.rel (%p13) target = $region8
    $region5: #{tpu_custom_call.1} parent=1 // loop_body
      %s17 = ssub.s32 %s12, 1
      %s18 = ssub.s32 %s12, 2
      %s19 = sadd.s32 %s12, 1
      %s20 = ssub.s32 %s12, %s19
      %p21 = scmp.eq.s32.totalorder %s20, 0
      %s23 = sadd.s32 %s22, 1
      %s24 = scalar_select %p21, %s22, %s23
      %p27 = pneg %p21
      %p28 = scmp.eq.s32.totalorder %s12, 1
      %p29 = por %p27, %p28
      %p30 = scmp.ne.s32.totalorder %s22, %s25
      %p31 = scmp.eq.s32.totalorder %s12, 0
      %p32 = por %p30, %p31
      %p33 = scmp.ne.s32.totalorder %s22, %s25
      %p34 = scmp.eq.s32.totalorder %s17, 1
      %p35 = por %p33, %p34
      %p36 = scmp.ne.s32.totalorder %s25, %s26
      %p37 = scmp.eq.s32.totalorder %s17, 0
      %p38 = por %p36, %p37
      %p39 = scmp.ne.s32.totalorder %s25, %s26
      %p40 = scmp.eq.s32.totalorder %s18, 1
      %p41 = por %p39, %p40
      %p43 = scmp.ne.s32.totalorder %s26, %s42
      %p44 = scmp.eq.s32.totalorder %s18, 0
      %p45 = por %p43, %p44
      %s47 = sadd.s32 %s46, 1
      %p50 = scmp.eq.s32.totalorder %s12, 1
      %p51 = scmp.ne.s32.totalorder %s46, %s48
      %p52 = scmp.eq.s32.totalorder %s12, 0
      %p53 = por %p51, %p52
      %p54 = scmp.ne.s32.totalorder %s46, %s48
      %p55 = scmp.eq.s32.totalorder %s17, 1
      %p56 = por %p54, %p55
      %p57 = scmp.ne.s32.totalorder %s48, %s49
      %p58 = scmp.eq.s32.totalorder %s17, 0
      %p59 = por %p57, %p58
      %p60 = scmp.ne.s32.totalorder %s48, %s49
      %p61 = scmp.eq.s32.totalorder %s18, 1
      %p62 = por %p60, %p61
      %p64 = scmp.ne.s32.totalorder %s49, %s63
      %p65 = scmp.eq.s32.totalorder %s18, 0
      %p66 = por %p64, %p65
      %s68 = sadd.s32 %s67, 1
      %p71 = scmp.eq.s32.totalorder %s12, 1
      %p72 = scmp.ne.s32.totalorder %s67, %s69
      %p73 = scmp.eq.s32.totalorder %s12, 0
      %p74 = por %p72, %p73
      %p75 = scmp.ne.s32.totalorder %s67, %s69
      %p76 = scmp.eq.s32.totalorder %s17, 1
      %p77 = por %p75, %p76
      %p78 = scmp.ne.s32.totalorder %s69, %s70
      %p79 = scmp.eq.s32.totalorder %s17, 0
      %p80 = por %p78, %p79
      %p81 = scmp.ne.s32.totalorder %s69, %s70
      %p82 = scmp.eq.s32.totalorder %s18, 1
      %p83 = por %p81, %p82
      %p85 = scmp.ne.s32.totalorder %s70, %s84
      %p86 = scmp.eq.s32.totalorder %s18, 0
      %p87 = por %p85, %p86
      %s88 = ssub.s32 %s12, %s19
      %p89 = scmp.eq.s32.totalorder %s88, 0
      %s91 = sadd.s32 %s90, 1
      %s92 = scalar_select %p89, %s90, %s91
      %p95 = pneg %p89
      %p96 = scmp.eq.s32.totalorder %s12, 1
      %p97 = por %p95, %p96
      %p98 = scmp.ne.s32.totalorder %s90, %s93
      %p99 = scmp.eq.s32.totalorder %s12, 0
      %p100 = por %p98, %p99
      %p101 = scmp.ne.s32.totalorder %s90, %s93
      %p102 = scmp.eq.s32.totalorder %s17, 1
      %p103 = por %p101, %p102
      %p104 = scmp.ne.s32.totalorder %s93, %s94
      %p105 = scmp.eq.s32.totalorder %s17, 0
      %p106 = por %p104, %p105
      %p107 = scmp.ne.s32.totalorder %s93, %s94
      %p108 = scmp.eq.s32.totalorder %s18, 1
      %p109 = por %p107, %p108
      %p111 = scmp.ne.s32.totalorder %s94, %s110
      %p112 = scmp.eq.s32.totalorder %s18, 0
      %p113 = por %p111, %p112
      %p114 = scmp.le.s32.totalorder 1, %s12
      %p115 = scmp.lt.s32.totalorder %s12, 3
      %p116 = pnand %p114, %p115
      %p117 = pneg %p116
      // Predicated region
      $region9: #{tpu_custom_call.1} parent=5 // pred_check
        _
      $region10: #{tpu_custom_call.1} parent=5 // pred_check_branch
        %119 = sbr.rel (%p116) target = $region12
      $region11: #{tpu_custom_call.1} parent=5 // pred_region
        %s120 = ssub.s32 %s12, 1
        // Predicated region
        $region13: #{tpu_custom_call.1} parent=11 // pred_check
          %p121 = pneg %p59
        $region14: #{tpu_custom_call.1} parent=11 // pred_check_branch
          %123 = sbr.rel (%p121) target = $region16
        $region15: #{tpu_custom_call.1} parent=11 // pred_region
          _
        $region16: #{tpu_custom_call.1} parent=11 // pred_fallthru
          _
        // Predicated region
        $region17: #{tpu_custom_call.1} parent=11 // pred_check
          %p124 = pneg %p80
        $region18: #{tpu_custom_call.1} parent=11 // pred_check_branch
          %126 = sbr.rel (%p124) target = $region20
        $region19: #{tpu_custom_call.1} parent=11 // pred_region
          _
        $region20: #{tpu_custom_call.1} parent=11 // pred_fallthru
          _
      $region12: #{tpu_custom_call.1} parent=5 // pred_fallthru
        _
      %p127 = scmp.lt.s32.totalorder %s12, 2
      // Predicated region
      $region21: #{tpu_custom_call.1} parent=5 // pred_check
        %p128 = pneg %p127
      $region22: #{tpu_custom_call.1} parent=5 // pred_check_branch
        %130 = sbr.rel (%p128) target = $region24
      $region23: #{tpu_custom_call.1} parent=5 // pred_region
        // Predicated region
        $region25: #{tpu_custom_call.1} parent=23 // pred_check
          %p131 = pneg %p32
        $region26: #{tpu_custom_call.1} parent=23 // pred_check_branch
          %133 = sbr.rel (%p131) target = $region28
        $region27: #{tpu_custom_call.1} parent=23 // pred_region
          %s134 = sand.u32 %s22, 1
          %s135 = scalar_lea.sflag [#allocation3], %s134
          %s136 = sand.u32 %s22, 1
          %s137 = smul.addr %s136, 64
          %s138 = scalar_lea.vmem [#allocation2], %s137
          %140 = vsyncadd %s135, 0
          %s141 = smul.addr %s12, 16
          %s142 = smul.addr %s141, 4
          %s143 = scalar_lea.hbm %s0, %s142
          %s144 = sshll.u32 %s143, 4
          %s145 = int_to_ptr.hbm [resolvable:$true] %s144
          %s146 = sshll.u32 %s138, 4
          %s147 = int_to_ptr.vmem [resolvable:$true] %s146
          %152 = dma.hbm_to_vmem [thread:$0]  %s145, 1024, %s147, %s135, 128, 128, 8
        $region28: #{tpu_custom_call.1} parent=23 // pred_fallthru
          _
      $region24: #{tpu_custom_call.1} parent=5 // pred_fallthru
        _
      %p153 = scmp.le.s32.totalorder 1, %s12
      %p154 = scmp.lt.s32.totalorder %s12, 3
      %p155 = pnand %p153, %p154
      %p156 = pneg %p155
      // Predicated region
      $region29: #{tpu_custom_call.1} parent=5 // pred_check
        _
      $region30: #{tpu_custom_call.1} parent=5 // pred_check_branch
        %158 = sbr.rel (%p155) target = $region32
      $region31: #{tpu_custom_call.1} parent=5 // pred_region
        %s159 = ssub.s32 %s12, 1
        %s160 = sand.u32 %s25, 1
        %s161 = scalar_lea.sflag [#allocation3], %s160
        %s162 = sand.u32 %s25, 1
        %s163 = smul.addr %s162, 64
        %s164 = scalar_lea.vmem [#allocation2], %s163
        // Predicated region
        $region33: #{tpu_custom_call.1} parent=31 // pred_check
          %p165 = pneg %p38
        $region34: #{tpu_custom_call.1} parent=31 // pred_check_branch
          %167 = sbr.rel (%p165) target = $region36
        $region35: #{tpu_custom_call.1} parent=31 // pred_region
          %169 = dma.done %s161, 1024
        $region36: #{tpu_custom_call.1} parent=31 // pred_fallthru
          _
        %s170 = sand.u32 %s25, 1
        %s171 = scalar_lea.sflag [#allocation3], %s170
        %s172 = sand.u32 %s25, 1
        %s173 = smul.addr %s172, 64
        %s174 = scalar_lea.vmem [#allocation2], %s173
        %p175 = pneg %p38
        %p176 = pneg %p35
        %p177 = pneg %p59
        %p178 = pneg %p56
        %p179 = pneg %p80
        %p180 = pneg %p77
        %p181 = pneg %p106
        %p182 = pneg %p103
        %p183 = scmp.lt.s32.totalorder %s17, 1
        %s184 = scalar_select %p183, %s17, 1
        %s185 = smul.addr %s184, 2
        %s186 = smul.addr %s185, 4
        %s187 = scalar_lea.vmem %s3, %s186
        %p188 = scmp.lt.s32.totalorder %s17, 1
        %s189 = scalar_select %p188, %s17, 1
        %s190 = smul.addr %s189, 2
        %s191 = smul.addr %s190, 4
        %s192 = scalar_lea.vmem %s3, %s191
        %v194 = vlaneseq
        %v195 = vand.u32 %v194, 127
        %v196 = vadd.s32 %v195, 128
        %vm197 = vcmp.lt.s32.totalorder %v195, 0
        %v198 = vsub.s32 0, %v195
        %v199 = vsel %vm197, %v198, %v195
        %v200 = vshrl.u32 %v199, 4
        %v201 = vand.u32 %v199, 15
        %v202 = vsub.s32 0, %v201
        %v203 = vsel %vm197, %v202, %v201
        %vm204 = vcmp.lt.s32.totalorder %v196, 0
        %v205 = vsub.s32 0, %v196
        %v206 = vsel %vm204, %v205, %v196
        %v207 = vshrl.u32 %v206, 4
        %v208 = vand.u32 %v206, 15
        %v209 = vsub.s32 0, %v208
        %v210 = vsel %vm204, %v209, %v208
        %vm211 = vcmp.ne.s32.totalorder %v203, 0
        %vm212 = vcmp.ne.s32.totalorder %v210, 0
        %vm213 = vcmp.lt.s32.totalorder %v203, 0
        %vm214 = vcmp.lt.s32.totalorder %v210, 0
        %vm215 = vmand %vm213, %vm211
        %vm216 = vmand %vm214, %vm212
        %v217 = vadd.s32 %v203, 16
        %v218 = vadd.s32 %v210, 16
        %v219 = vsel %vm215, %v217, %v203
        %v220 = vsel %vm216, %v218, %v210
        %vm221 = vcmp.ge.s32.totalorder %v219, 1
        %vm222 = vcmp.ge.s32.totalorder %v220, 1
        %vm223 = vcmp.le.s32.totalorder %v219, 14
        %vm224 = vcmp.le.s32.totalorder %v220, 14
        %v225 = vld [vmem:[%s1] sm:$0xf]
        %v226 = vld [vmem:[%s1 + $0x4] sm:$0xf]
        %v227 = vld [vmem:[%s1 + $0x8] sm:$0xf]
        %v228 = vld [vmem:[%s1 + $0xc] sm:$0xf]
        %v229 = vld [vmem:[%s1 + $0x10] sm:$0xf]
        %v230 = vld [vmem:[%s1 + $0x14] sm:$0xf]
        %v231 = vld [vmem:[%s1 + $0x18] sm:$0xf]
        %v232 = vld [vmem:[%s1 + $0x1c] sm:$0xf]
        %v233 = vld [vmem:[%s1 + $0x20] sm:$0xf]
        %v234 = vld [vmem:[%s2] sm:$0x7]
        %v235 = vld [vmem:[%s164] sm:$0xff]
        %v236 = vld [vmem:[%s164 + $0x8] sm:$0xff]
        %v237 = vld [vmem:[%s164 + $0x10] sm:$0xff]
        %v238 = vld [vmem:[%s164 + $0x18] sm:$0xff]
        %v239 = vld [vmem:[%s164 + $0x20] sm:$0xff]
        %v240 = vld [vmem:[%s164 + $0x28] sm:$0xff]
        %v241 = vld [vmem:[%s164 + $0x30] sm:$0xff]
        %v242 = vld [vmem:[%s164 + $0x38] sm:$0xff]
        %v252 = vunpack.c.l.b16 %v225
        %v253 = vunpack.c.l.b16 %v226
        %v254 = vunpack.c.l.b16 %v227
        %v255 = vunpack.c.l.b16 %v228
        %v256 = vunpack.c.l.b16 %v229
        %v257 = vunpack.c.l.b16 %v230
        %v258 = vunpack.c.l.b16 %v231
        %v259 = vunpack.c.l.b16 %v232
        %v260 = vunpack.c.l.b16 %v233
        %v261 = vpack.c.b16 %v253, %v252
        %v262 = vpack.c.b16 %v255, %v254
        %v263 = vpack.c.b16 %v257, %v256
        %v264 = vpack.c.b16 %v259, %v258
        %v265 = vpack.c.b16 %v260, %v260
        %v274 = vunpack.c.l.b16 %v235
        %v275 = vunpack.c.h.b16 %v235
        %v276 = vunpack.c.l.b16 %v236
        %v277 = vunpack.c.h.b16 %v236
        %v278 = vunpack.c.l.b16 %v237
        %v279 = vunpack.c.h.b16 %v237
        %v280 = vunpack.c.l.b16 %v238
        %v281 = vunpack.c.h.b16 %v238
        %v282 = vunpack.c.l.b16 %v239
        %v283 = vunpack.c.h.b16 %v239
        %v284 = vunpack.c.l.b16 %v240
        %v285 = vunpack.c.h.b16 %v240
        %v286 = vunpack.c.l.b16 %v241
        %v287 = vunpack.c.h.b16 %v241
        %v288 = vunpack.c.l.b16 %v242
        %v289 = vunpack.c.h.b16 %v242
        %v290 = vpack.c.b16 %v276, %v274
        %v291 = vpack.c.b16 %v277, %v275
        %v292 = vpack.c.b16 %v280, %v278
        %v293 = vpack.c.b16 %v281, %v279
        %v294 = vpack.c.b16 %v284, %v282
        %v295 = vpack.c.b16 %v285, %v283
        %v296 = vpack.c.b16 %v288, %v286
        %v297 = vpack.c.b16 %v289, %v287
        %vm306 = vcmask 523264
        %v308 = vsel %vm306, %v261, 0
        %v311 = vsel %vm306, %v262, 0
        %v314 = vsel %vm306, %v263, 0
        %v317 = vsel %vm306, %v264, 0
        %v320 = vsel %vm306, %v265, 0
        %322 = vmatpush.bf16.msra.mxu0 0
        %323 = vmatpush.bf16.msra.mxu0 0
        %324 = vmatpush.bf16.msra.mxu0 0
        %325 = vmatpush.bf16.msra.mxu0 0
        %326 = vmatpush.bf16.msra.mxu0 %v296
        %327 = vmatpush.bf16.msra.mxu0 %v294
        %328 = vmatpush.bf16.msra.mxu0 %v292
        %329 = vmatpush.bf16.msra.mxu0 %v290
        %330 = vmatmul.bf16.gmra.mxu0 %v308
        %v331 = vpop.f32.mrf.mxu0
        %v332 = vadd.f32 0.0, %v331
        %v333 = vpop.f32.mrf.mxu0
        %v334 = vadd.f32 0.0, %v333
        %335 = vmatmul.bf16.gmra.mxu0 %v311
        %v336 = vpop.f32.mrf.mxu0
        %v337 = vadd.f32 0.0, %v336
        %v338 = vpop.f32.mrf.mxu0
        %v339 = vadd.f32 0.0, %v338
        %340 = vmatmul.bf16.gmra.mxu0 %v314
        %v341 = vpop.f32.mrf.mxu0
        %v342 = vadd.f32 0.0, %v341
        %v343 = vpop.f32.mrf.mxu0
        %v344 = vadd.f32 0.0, %v343
        %345 = vmatmul.bf16.gmra.mxu0 %v317
        %v346 = vpop.f32.mrf.mxu0
        %v347 = vadd.f32 0.0, %v346
        %v348 = vpop.f32.mrf.mxu0
        %v349 = vadd.f32 0.0, %v348
        %350 = vmatmul.bf16.gmra.mxu0 %v320
        %v351 = vpop.f32.mrf.mxu0
        %v352 = vadd.f32 0.0, %v351
        %v353 = vpop.f32.mrf.mxu0
        %354 = vdwg.mxu0
        %355 = vmatpush.bf16.msra.mxu0 0
        %356 = vmatpush.bf16.msra.mxu0 0
        %357 = vmatpush.bf16.msra.mxu0 0
        %358 = vmatpush.bf16.msra.mxu0 0
        %359 = vmatpush.bf16.msra.mxu0 %v297
        %360 = vmatpush.bf16.msra.mxu0 %v295
        %361 = vmatpush.bf16.msra.mxu0 %v293
        %362 = vmatpush.bf16.msra.mxu0 %v291
        %363 = vmatmul.bf16.gmra.mxu0 %v308
        %v364 = vpop.f32.mrf.mxu0
        %v365 = vadd.f32 0.0, %v364
        %v366 = vpop.f32.mrf.mxu0
        %v367 = vadd.f32 0.0, %v366
        %368 = vmatmul.bf16.gmra.mxu0 %v311
        %v369 = vpop.f32.mrf.mxu0
        %v370 = vadd.f32 0.0, %v369
        %v371 = vpop.f32.mrf.mxu0
        %v372 = vadd.f32 0.0, %v371
        %373 = vmatmul.bf16.gmra.mxu0 %v314
        %v374 = vpop.f32.mrf.mxu0
        %v375 = vadd.f32 0.0, %v374
        %v376 = vpop.f32.mrf.mxu0
        %v377 = vadd.f32 0.0, %v376
        %378 = vmatmul.bf16.gmra.mxu0 %v317
        %v379 = vpop.f32.mrf.mxu0
        %v380 = vadd.f32 0.0, %v379
        %v381 = vpop.f32.mrf.mxu0
        %v382 = vadd.f32 0.0, %v381
        %383 = vmatmul.bf16.gmra.mxu0 %v320
        %v384 = vpop.f32.mrf.mxu0
        %v385 = vadd.f32 0.0, %v384
        %v386 = vpop.f32.mrf.mxu0
        %387 = vdwg.mxu0
        %390 = vrot.lane.b32.xlu0 %v332, 17
        %v391 = vpop.permute.xlu0 %390
        %392 = vrot.lane.b32.xlu0 %v365, 17
        %v393 = vpop.permute.xlu0 %392
        %vm394 = vcmask 138240
        %v395 = vsel %vm394, %v391, %v393
        %v398 = vsel %vm394, 0.0, %v391
        %v399 = vsel %vm221, 1, 0
        %v400 = vsel %vm222, 1, 0
        %vm401 = vcmp.eq.s32.totalorder %v399, 1
        %vm402 = vcmp.eq.s32.totalorder %v400, 1
        %v403 = vsel %vm401, %v398, 0.0
        %v404 = vsel %vm402, %v395, 0.0
        %v405 = vadd.f32 %v403, 0.0
        %v406 = vadd.f32 %v404, 0.0
        %409 = vrot.lane.b32.xlu0 %v334, 16
        %v410 = vpop.permute.xlu0 %409
        %411 = vrot.lane.b32.xlu0 %v367, 16
        %v412 = vpop.permute.xlu0 %411
        %vm413 = vcmask 130048
        %v414 = vsel %vm413, %v410, %v412
        %v417 = vsel %vm413, 0.0, %v410
        %v418 = vadd.f32 %v405, %v417
        %v419 = vadd.f32 %v406, %v414
        %422 = vrot.lane.b32.xlu0 %v337, 15
        %v423 = vpop.permute.xlu0 %422
        %424 = vrot.lane.b32.xlu0 %v370, 15
        %v425 = vpop.permute.xlu0 %424
        %vm426 = vcmask 121856
        %v427 = vsel %vm426, %v423, %v425
        %v430 = vsel %vm426, 0.0, %v423
        %v431 = vsel %vm223, 1, 0
        %v432 = vsel %vm224, 1, 0
        %vm433 = vcmp.eq.s32.totalorder %v431, 1
        %vm434 = vcmp.eq.s32.totalorder %v432, 1
        %v435 = vsel %vm433, %v430, 0.0
        %v436 = vsel %vm434, %v427, 0.0
        %v437 = vadd.f32 %v418, %v435
        %v438 = vadd.f32 %v419, %v436
        %441 = vrot.lane.b32.xlu0 %v339, 1
        %v442 = vpop.permute.xlu0 %441
        %443 = vrot.lane.b32.xlu0 %v372, 1
        %v444 = vpop.permute.xlu0 %443
        %vm445 = vcmask 7168
        %v446 = vsel %vm445, %v442, %v444
        %v449 = vsel %vm445, 0.0, %v442
        %v450 = vsel %vm401, %v449, 0.0
        %v451 = vsel %vm402, %v446, 0.0
        %v452 = vadd.f32 %v437, %v450
        %v453 = vadd.f32 %v438, %v451
        %v454 = vadd.f32 %v452, %v342
        %v455 = vadd.f32 %v453, %v375
        %458 = vrot.lane.b32.xlu0 %v344, 127
        %v459 = vpop.permute.xlu0 %458
        %460 = vrot.lane.b32.xlu0 %v377, 127
        %v461 = vpop.permute.xlu0 %460
        %vm462 = vcmask 1039360
        %v463 = vsel %vm462, %v459, %v461
        %v466 = vsel %vm462, %v461, 0.0
        %v467 = vsel %vm433, %v463, 0.0
        %v468 = vsel %vm434, %v466, 0.0
        %v469 = vadd.f32 %v454, %v467
        %v470 = vadd.f32 %v455, %v468
        %473 = vrot.lane.b32.xlu0 %v347, 113
        %v474 = vpop.permute.xlu0 %473
        %475 = vrot.lane.b32.xlu0 %v380, 113
        %v476 = vpop.permute.xlu0 %475
        %vm477 = vcmask 924672
        %v478 = vsel %vm477, %v474, %v476
        %v481 = vsel %vm477, %v476, 0.0
        %v482 = vsel %vm401, %v478, 0.0
        %v483 = vsel %vm402, %v481, 0.0
        %v484 = vadd.f32 %v469, %v482
        %v485 = vadd.f32 %v470, %v483
        %488 = vrot.lane.b32.xlu0 %v349, 112
        %v489 = vpop.permute.xlu0 %488
        %490 = vrot.lane.b32.xlu0 %v382, 112
        %v491 = vpop.permute.xlu0 %490
        %vm492 = vcmask 916480
        %v493 = vsel %vm492, %v489, %v491
        %v496 = vsel %vm492, %v491, 0.0
        %v497 = vadd.f32 %v484, %v493
        %v498 = vadd.f32 %v485, %v496
        %501 = vrot.lane.b32.xlu0 %v352, 111
        %v502 = vpop.permute.xlu0 %501
        %503 = vrot.lane.b32.xlu0 %v385, 111
        %v504 = vpop.permute.xlu0 %503
        %vm505 = vcmask 908288
        %v506 = vsel %vm505, %v502, %v504
        %v509 = vsel %vm505, %v504, 0.0
        %v510 = vsel %vm433, %v506, 0.0
        %v511 = vsel %vm434, %v509, 0.0
        %v512 = vadd.f32 %v497, %v510
        %v513 = vadd.f32 %v498, %v511
        %515 = vset.pattern.permute.xlu0 0
        %516 = vperm.xlu0 %515, %v234
        %v517 = vpop.permute.xlu0 %516
        %v519 = vadd.f32 %v512, %v517
        %v520 = vadd.f32 %v513, %v517
        %v521 = vxor.u32 %v519, 2147483648
        %v522 = vxor.u32 %v520, 2147483648
        %v523 = vmul.f32 %v521, 1.442695
        %v524 = vpow.pop %v523
        %v525 = vmul.f32 %v522, 1.442695
        %v526 = vpow.pop %v525
        %v527 = vadd.f32 %v524, 1.0
        %v528 = vadd.f32 %v526, 1.0
        %v529 = vrcp.pop %v527
        %v530 = vmul.f32 %v527, %v529
        %v531 = vsub.f32 1.0, %v530
        %v532 = vmul.f32 %v529, %v531
        %v533 = vadd.f32 %v529, %v532
        %vm534 = vweird.f32 %v527
        %vm535 = vweird.f32 %v529
        %vm536 = vmor %vm534, %vm535
        %v537 = vsel %vm536, %v529, %v533
        %v538 = vand.u32 2147483647, %v527
        %vm539 = vcmp.eq.f32.partialorder %v538, 8.507059e+37
        %v540 = vand.u32 %v527, 2147483648
        %v541 = vor.u32 1.1754944e-38, %v540
        %v542 = vsel %vm539, %v541, %v537
        %v543 = vmul.f32 1.0, %v542
        %v544 = vrcp.pop %v528
        %v545 = vmul.f32 %v528, %v544
        %v546 = vsub.f32 1.0, %v545
        %v547 = vmul.f32 %v544, %v546
        %v548 = vadd.f32 %v544, %v547
        %vm549 = vweird.f32 %v528
        %vm550 = vweird.f32 %v544
        %vm551 = vmor %vm549, %vm550
        %v552 = vsel %vm551, %v544, %v548
        %v553 = vand.u32 2147483647, %v528
        %vm554 = vcmp.eq.f32.partialorder %v553, 8.507059e+37
        %v555 = vand.u32 %v528, 2147483648
        %v556 = vor.u32 1.1754944e-38, %v555
        %v557 = vsel %vm554, %v556, %v552
        %v558 = vmul.f32 1.0, %v557
        %v561 = vrot.slane %v558, 4
        %vm562 = vcmask 1043456
        %v563 = vsel %vm562, %v543, %v561
        %565 = vst [vmem:[%s192] sm:$0x77] %v563
        %p566 = scmp.lt.s32.totalorder %s17, 1
        %s567 = scalar_select %p566, %s17, 1
        %s568 = smul.addr %s567, 2
        %s569 = smul.addr %s568, 4
        %s570 = scalar_lea.vmem %s3, %s569
        // Predicated region
        $region37: #{tpu_custom_call.1} parent=31 // pred_check
          %p571 = pneg %p103
        $region38: #{tpu_custom_call.1} parent=31 // pred_check_branch
          %573 = sbr.rel (%p571) target = $region40
        $region39: #{tpu_custom_call.1} parent=31 // pred_region
          _
        $region40: #{tpu_custom_call.1} parent=31 // pred_fallthru
          _
      $region32: #{tpu_custom_call.1} parent=5 // pred_fallthru
        _
      %p574 = scmp.le.s32.totalorder 2, %s12
      // Predicated region
      $region41: #{tpu_custom_call.1} parent=5 // pred_check
        %p575 = pneg %p574
      $region42: #{tpu_custom_call.1} parent=5 // pred_check_branch
        %577 = sbr.rel (%p575) target = $region44
      $region43: #{tpu_custom_call.1} parent=5 // pred_region
        %s578 = ssub.s32 %s12, 2
        // Predicated region
        $region45: #{tpu_custom_call.1} parent=43 // pred_check
          %p579 = pneg %p109
        $region46: #{tpu_custom_call.1} parent=43 // pred_check_branch
          %581 = sbr.rel (%p579) target = $region48
        $region47: #{tpu_custom_call.1} parent=43 // pred_region
          %p582 = scmp.lt.s32.totalorder %s18, 1
          %s583 = scalar_select %p582, %s18, 1
          %s584 = smul.addr %s583, 2
          %s585 = smul.addr %s584, 4
          %s586 = scalar_lea.vmem %s3, %s585
        $region48: #{tpu_custom_call.1} parent=43 // pred_fallthru
          _
      $region44: #{tpu_custom_call.1} parent=5 // pred_fallthru
        _
    $region6: #{tpu_custom_call.1} parent=1 // loop_footer
      %s16 = sadd.s32 1, %s12
    $region7: #{tpu_custom_call.1} parent=1 // loop_footer_branch
      %11 = sbr.rel target = $region3
    $region8: #{tpu_custom_call.1} parent=1 // loop_exit
      _
    %587 = vsyncpa [#allocation3], 1
    %s588 = scalar_lea.sflag [#allocation3], 1
    %589 = vsyncpa %s588, 1

</llo_original>
